<compile_context>
chip_gen: v7x
topology: tpu7x:2x2x1
jax: 0.10.0
libtpu: 0.0.40
codegen_flags: <defaults>
</compile_context>

<pallas_src>
import jax
import jax.numpy as jnp
from jax.experimental import pallas as pl
from jax.experimental.pallas import tpu as pltpu


def _mish_kernel(x_ref, o_ref):
    x_in = x_ref[...]
    # bf16 math for bf16 tensors (halves VALU / vreg pressure on v6e/v7x);
    # everything else (f32 inputs) stays in f32.
    cdt = jnp.bfloat16 if x_in.dtype == jnp.bfloat16 else jnp.float32
    x = x_in.astype(cdt)
    two = jnp.array(2.0, dtype=cdt)

    w = jnp.exp(-jnp.abs(x))          # single EUP transcendental, never overflows
    ww = w * w
    pos = x >= 0
    num = jnp.where(pos, 1.0 + two * w, ww + two * w)
    den = num + jnp.where(pos, two * ww, two)
    # Exact divide: memory-bound kernel, so full precision costs nothing.
    o_ref[...] = (x * (num / den)).astype(o_ref.dtype)


def _mish_ref_jnp(x):
    """Plain-jnp Mish for tiny ragged tails (< 128 elements)."""
    xf = x.astype(jnp.float32)
    return (xf * jnp.tanh(jax.nn.softplus(xf))).astype(x.dtype)


def _sublane_min(dtype):
    itemsize = jnp.dtype(dtype).itemsize
    return {4: 8, 2: 16, 1: 32}.get(itemsize, 8)


def _round_up(a, b):
    return ((a + b - 1) // b) * b


def _choose_layout(n, sub_min):
    """Pick (rows, cols) with cols a multiple of 128 and n % cols == 0.

    Prefers the widest cols that still leaves enough rows (>= 2*sub_min) to
    split the grid across both v7x TensorCores; otherwise returns the widest
    valid layout (a single small block is fine for tiny tensors)."""
    best = None
    for cols in (2048, 1024, 512, 256, 128):
        if n % cols == 0:
            rows = n // cols
            if best is None:
                best = (rows, cols)
            if rows >= 2 * sub_min:
                return rows, cols
    return best


def _mish_2d(x2d, sub_min, target_block_bytes, min_steps=2):
    rows, cols = x2d.shape
    itemsize = jnp.dtype(x2d.dtype).itemsize

    if rows <= sub_min:
        tr = rows                       # full-extent block along rows (always legal)
    else:
        # Big lane-dense blocks (~target_block_bytes), rounded to the sublane tile.
        tr = (target_block_bytes // (cols * itemsize)) // sub_min * sub_min
        tr = int(max(sub_min, min(tr, rows)))
        # Guarantee >= min_steps grid steps so both v7x TensorCores get work
        # (harmless extra step on single-TC v5e/v6e). Pallas masks partial blocks.
        if pl.cdiv(rows, tr) < min_steps:
            tr = int(max(sub_min, _round_up(pl.cdiv(rows, min_steps), sub_min)))

    grid = (pl.cdiv(rows, tr),)

    n = rows * cols
    cost = pl.CostEstimate(
        flops=13 * n,                   # ~13 VALU ops / element
        transcendentals=2 * n,          # exp + divide
        bytes_accessed=2 * n * itemsize,
    )

    return pl.pallas_call(
        _mish_kernel,
        out_shape=jax.ShapeDtypeStruct((rows, cols), x2d.dtype),
        grid_spec=pltpu.PrefetchScalarGridSpec(
            num_scalar_prefetch=0,
            grid=grid,
            in_specs=[pl.BlockSpec((tr, cols), lambda i: (i, 0))],
            out_specs=pl.BlockSpec((tr, cols), lambda i: (i, 0)),
        ),
        compiler_params=pltpu.CompilerParams(
            dimension_semantics=("parallel",),   # shards the grid across TCs on v7x
            vmem_limit_bytes=32 << 20,           # 2 arrays x 2 buffers x 4 MiB = 16 MiB used
        ),
        cost_estimate=cost,
    )(x2d)


def mish(x, *, target_block_bytes=4 << 20):
    """Mish activation: x * tanh(softplus(x)). Any shape, float dtype."""
    orig_shape = x.shape
    n = x.size
    if n == 0:
        return x
    sub_min = _sublane_min(x.dtype)

    layout = _choose_layout(n, sub_min)
    if layout is not None:
        # Fast path: free reshape to a lane-dense 2-D slab, no pad, no slice.
        rows, cols = layout
        out2d = _mish_2d(x.reshape(rows, cols), sub_min, target_block_bytes)
        return out2d.reshape(orig_shape)

    # Ragged size (n % 128 != 0): kernel on the aligned bulk, jnp on the
    # tiny (< 128-element) tail.  Avoids the old pad+slice full HBM passes.
    flat = jnp.ravel(x)
    cols = 128
    bulk = (n // cols) * cols
    if bulk == 0:
        return _mish_ref_jnp(flat).reshape(orig_shape)
    bulk_out = _mish_2d(flat[:bulk].reshape(bulk // cols, cols),
                        sub_min, target_block_bytes)
    tail_out = _mish_ref_jnp(flat[bulk:])
    return jnp.concatenate([bulk_out.reshape(-1), tail_out]).reshape(orig_shape)


if __name__ == "__main__":
    key = jax.random.PRNGKey(0)
    k0, k1, k2, k3 = jax.random.split(key, 4)

    def ref_mish(v):
        vf = v.astype(jnp.float32)
        return vf * jnp.tanh(jax.nn.softplus(vf))

    # 1) NCHW f32 activation (fast path, multi-step parallel grid).
    x = jax.random.normal(k0, (2, 4, 16, 16), dtype=jnp.float32)
    y = jax.block_until_ready(mish(x))
    assert y.shape == x.shape and y.dtype == x.dtype
    err = float(jnp.max(jnp.abs(y.astype(jnp.float32) - ref_mish(x))))
    assert err < 1e-4, f"f32 fast-path mismatch vs reference: {err}"

    # 2) bf16 tensor (bf16 in-kernel math path).
    xb = jax.random.normal(k1, (4, 8, 128), dtype=jnp.bfloat16)
    yb = jax.block_until_ready(mish(xb))
    assert yb.shape == xb.shape and yb.dtype == xb.dtype
    errb = float(jnp.max(jnp.abs(yb.astype(jnp.float32) - ref_mish(xb))))
    assert errb < 1e-1, f"bf16 path mismatch vs reference: {errb}"

    # 3) Ragged size: kernel handles the 128-aligned bulk, jnp the small tail.
    xr = jax.random.normal(k2, (5, 7, 9), dtype=jnp.float32)
    yr = jax.block_until_ready(mish(xr))
    assert yr.shape == xr.shape and yr.dtype == xr.dtype
    errr = float(jnp.max(jnp.abs(yr.astype(jnp.float32) - ref_mish(xr))))
    assert errr < 1e-4, f"ragged-path mismatch vs reference: {errr}"

    # 4) Tiny tensor below one lane row (pure jnp path).
    xt = jax.random.normal(k3, (3, 5, 7), dtype=jnp.float32)
    yt = jax.block_until_ready(mish(xt))
    errt = float(jnp.max(jnp.abs(yt.astype(jnp.float32) - ref_mish(xt))))
    assert yt.shape == xt.shape and yt.dtype == xt.dtype and errt < 1e-4

    print("KERNEL_OK")
</pallas_src>

<mosaic_0001>
module attributes {stable_mosaic.version = 11 : i64} {
  func.func @_mish_kernel(%arg0: i32, %arg1: memref<8x128xf32, #tpu.memory_space<vmem>>, %arg2: memref<8x128xf32, #tpu.memory_space<vmem>>) attributes {dimension_semantics = [#tpu.dimension_semantics<parallel>], iteration_bounds = array<i64: 2>, scalar_prefetch = 0 : i64, scratch_operands = 0 : i64, tpu.core_type = #tpu.core_type<tc>, window_params = [{transform_indices = @transform_0, window_bounds = array<i64: 8, 128>}, {transform_indices = @transform_1, window_bounds = array<i64: 8, 128>}]} {
    %c0 = arith.constant 0 : index
    %c0_0 = arith.constant 0 : index
    %0 = vector.load %arg1[%c0, %c0_0] : memref<8x128xf32, #tpu.memory_space<vmem>>, vector<8x128xf32>
    %1 = math.absf %0 : vector<8x128xf32>
    %cst = arith.constant 0.000000e+00 : f32
    %2 = vector.broadcast %cst : f32 to vector<8x128xf32>
    %3 = arith.subf %2, %1 : vector<8x128xf32>
    %4 = math.exp %3 : vector<8x128xf32>
    %5 = arith.mulf %4, %4 : vector<8x128xf32>
    %cst_1 = arith.constant 0.000000e+00 : f32
    %6 = vector.broadcast %cst_1 : f32 to vector<8x128xf32>
    %7 = arith.cmpf oge, %0, %6 : vector<8x128xf32>
    %cst_2 = arith.constant 2.000000e+00 : f32
    %8 = vector.broadcast %cst_2 : f32 to vector<8x128xf32>
    %9 = arith.mulf %8, %4 : vector<8x128xf32>
    %cst_3 = arith.constant 1.000000e+00 : f32
    %10 = vector.broadcast %cst_3 : f32 to vector<8x128xf32>
    %11 = arith.addf %10, %9 : vector<8x128xf32>
    %cst_4 = arith.constant 2.000000e+00 : f32
    %12 = vector.broadcast %cst_4 : f32 to vector<8x128xf32>
    %13 = arith.mulf %12, %4 : vector<8x128xf32>
    %14 = arith.addf %5, %13 : vector<8x128xf32>
    %15 = arith.select %7, %11, %14 : vector<8x128xi1>, vector<8x128xf32>
    %cst_5 = arith.constant 2.000000e+00 : f32
    %16 = vector.broadcast %cst_5 : f32 to vector<8x128xf32>
    %17 = arith.mulf %16, %5 : vector<8x128xf32>
    %cst_6 = arith.constant 2.000000e+00 : f32
    %18 = vector.broadcast %cst_6 : f32 to vector<8x128xf32>
    %19 = arith.select %7, %17, %18 : vector<8x128xi1>, vector<8x128xf32>
    %20 = arith.addf %15, %19 : vector<8x128xf32>
    %21 = arith.divf %15, %20 : vector<8x128xf32>
    %22 = arith.mulf %0, %21 : vector<8x128xf32>
    %c0_7 = arith.constant 0 : index
    %c0_8 = arith.constant 0 : index
    %23 = vector.load %arg2[%c0_7, %c0_8] : memref<8x128xf32, #tpu.memory_space<vmem>>, vector<8x128xf32>
    tpu.vector_store %arg2[%c0_7, %c0_8], %22 {strides = array<i32>} : memref<8x128xf32, #tpu.memory_space<vmem>>, vector<8x128xf32>,
    return
  }
  func.func @transform_0(%arg0: i32) -> (i32, i32) {
    %c0_i32 = arith.constant 0 : i32
    %c0_i32_0 = arith.constant 0 : i32
    return %arg0, %c0_i32 : i32, i32
  }
  func.func @transform_1(%arg0: i32) -> (i32, i32) {
    %c0_i32 = arith.constant 0 : i32
    %c0_i32_0 = arith.constant 0 : i32
    return %arg0, %c0_i32 : i32, i32
  }
}

</mosaic_0001>

<llo_original>
// kernel: tpu_custom_call.1
$region0: #{tpu_custom_call.1}
  #allocation0 [shape = 'u32[]', space=smem, size = 0x4, offset = 0x4, fixed_abs, tag = 'smem constant byte address 0x4 - core index']
  #allocation1 [shape = 'u32[144,128]{1,0:T(1,128)}', space=vmem, size = 0x12000, scoped, tag = 'internal scratch']
  %s0 = inlined_call_operand.hbm [shape: f32[16,128], index: 0, kind: input, shape index: {}]
  %s1 = inlined_call_operand.hbm [shape: f32[16,128], index: 1, kind: output, shape index: {}]
  %s2 = sld [smem:[#allocation0]]
  $region41: #{tpu_custom_call.1} parent=0
    _
  %s4 = ssub.s32 1, %s2
  %s5 = scalar_select 0, %s4, %s2
  $region1: #{tpu_custom_call.1} parent=0
    #allocation2 [shape = 'u8[8192]{0}', space=vmem, size = 0x2000, scoped, tag = 'input window, operand 0']
    #allocation3 [shape = 's32[2]{0}', space=sflag, size = 0x8, scoped, tag = 'scoped memory for tpu_custom_call.1']
    #allocation4 [shape = 's32[2]{0}', space=sflag, size = 0x8, scoped, tag = 'scoped memory for tpu_custom_call.1']
    #allocation5 [shape = 'u8[8192]{0}', space=vmem, size = 0x2000, scoped, tag = 'output window, operand 0']
    %6 = vsyncpa [#allocation3], 0
    %s7 = scalar_lea.sflag [#allocation3], 1
    %8 = vsyncpa %s7, 0
    %9 = vsyncpa [#allocation4], 0
    %s10 = scalar_lea.sflag [#allocation4], 1
    %11 = vsyncpa %s10, 0
    loop: start=0, step=1, limit=4
    $region2: #{tpu_custom_call.1} parent=1 // loop_pre_header
      _
    $region3: #{tpu_custom_call.1} parent=1 // loop_header
      %s13 = sphi 0, %s17
      %p14 = scmp.ge.s32.totalorder %s13, 4
      %s23 = sphi 0, %s25
      %s26 = sphi 0, %s23
      %s27 = sphi 0, %s26
      %s43 = sphi 0, %s27
      %s49 = sphi 0, %s51
      %s52 = sphi 0, %s49
      %s53 = sphi 0, %s52
      %s69 = sphi 0, %s53
    $region4: #{tpu_custom_call.1} parent=1 // loop_header_branch
      %16 = sbr.rel (%p14) target = $region8
    $region5: #{tpu_custom_call.1} parent=1 // loop_body
      %s18 = ssub.s32 %s13, 1
      %s19 = ssub.s32 %s13, 2
      %s20 = sadd.s32 %s13, 1
      %s21 = ssub.s32 %s13, %s20
      %p22 = scmp.eq.s32.totalorder %s21, 0
      %s24 = sadd.s32 %s23, 1
      %s25 = scalar_select %p22, %s23, %s24
      %p28 = pneg %p22
      %p29 = scmp.eq.s32.totalorder %s13, 1
      %p30 = por %p28, %p29
      %p31 = scmp.ne.s32.totalorder %s23, %s26
      %p32 = scmp.eq.s32.totalorder %s13, 0
      %p33 = por %p31, %p32
      %p34 = scmp.ne.s32.totalorder %s23, %s26
      %p35 = scmp.eq.s32.totalorder %s18, 1
      %p36 = por %p34, %p35
      %p37 = scmp.ne.s32.totalorder %s26, %s27
      %p38 = scmp.eq.s32.totalorder %s18, 0
      %p39 = por %p37, %p38
      %p40 = scmp.ne.s32.totalorder %s26, %s27
      %p41 = scmp.eq.s32.totalorder %s19, 1
      %p42 = por %p40, %p41
      %p44 = scmp.ne.s32.totalorder %s27, %s43
      %p45 = scmp.eq.s32.totalorder %s19, 0
      %p46 = por %p44, %p45
      %s47 = ssub.s32 %s13, %s20
      %p48 = scmp.eq.s32.totalorder %s47, 0
      %s50 = sadd.s32 %s49, 1
      %s51 = scalar_select %p48, %s49, %s50
      %p54 = pneg %p48
      %p55 = scmp.eq.s32.totalorder %s13, 1
      %p56 = por %p54, %p55
      %p57 = scmp.ne.s32.totalorder %s49, %s52
      %p58 = scmp.eq.s32.totalorder %s13, 0
      %p59 = por %p57, %p58
      %p60 = scmp.ne.s32.totalorder %s49, %s52
      %p61 = scmp.eq.s32.totalorder %s18, 1
      %p62 = por %p60, %p61
      %p63 = scmp.ne.s32.totalorder %s52, %s53
      %p64 = scmp.eq.s32.totalorder %s18, 0
      %p65 = por %p63, %p64
      %p66 = scmp.ne.s32.totalorder %s52, %s53
      %p67 = scmp.eq.s32.totalorder %s19, 1
      %p68 = por %p66, %p67
      %p70 = scmp.ne.s32.totalorder %s53, %s69
      %p71 = scmp.eq.s32.totalorder %s19, 0
      %p72 = por %p70, %p71
      %p73 = scmp.le.s32.totalorder 1, %s13
      %p74 = scmp.lt.s32.totalorder %s13, 3
      %p75 = pnand %p73, %p74
      %p76 = pneg %p75
      // Predicated region
      $region9: #{tpu_custom_call.1} parent=5 // pred_check
        _
      $region10: #{tpu_custom_call.1} parent=5 // pred_check_branch
        %78 = sbr.rel (%p75) target = $region12
      $region11: #{tpu_custom_call.1} parent=5 // pred_region
        %s79 = ssub.s32 %s13, 1
      $region12: #{tpu_custom_call.1} parent=5 // pred_fallthru
        _
      %p80 = scmp.lt.s32.totalorder %s13, 2
      // Predicated region
      $region13: #{tpu_custom_call.1} parent=5 // pred_check
        %p81 = pneg %p80
      $region14: #{tpu_custom_call.1} parent=5 // pred_check_branch
        %83 = sbr.rel (%p81) target = $region16
      $region15: #{tpu_custom_call.1} parent=5 // pred_region
        // Predicated region
        $region17: #{tpu_custom_call.1} parent=15 // pred_check
          %p84 = pneg %p33
        $region18: #{tpu_custom_call.1} parent=15 // pred_check_branch
          %86 = sbr.rel (%p84) target = $region20
        $region19: #{tpu_custom_call.1} parent=15 // pred_region
          %s87 = sand.u32 %s23, 1
          %s88 = scalar_lea.sflag [#allocation3], %s87
          %s89 = sand.u32 %s23, 1
          %s90 = smul.addr %s89, 8
          %s91 = scalar_lea.vmem [#allocation2], %s90
          %s93 = ssub.s32 128, 128
          %94 = vsyncadd %s88, %s93
          %s95 = smul.addr %s13, 128
          %s96 = scalar_lea.hbm %s0, %s95
          %s98 = sshll.u32 %s91, 4
          %s99 = int_to_ptr.vmem [resolvable:$true] %s98
          %101 = dma.hbm_to_vmem [thread:$0]  %s96, 128, %s99, %s88
        $region20: #{tpu_custom_call.1} parent=15 // pred_fallthru
          _
      $region16: #{tpu_custom_call.1} parent=5 // pred_fallthru
        _
      %p102 = scmp.le.s32.totalorder 1, %s13
      %p103 = scmp.lt.s32.totalorder %s13, 3
      %p104 = pnand %p102, %p103
      %p105 = pneg %p104
      // Predicated region
      $region21: #{tpu_custom_call.1} parent=5 // pred_check
        _
      $region22: #{tpu_custom_call.1} parent=5 // pred_check_branch
        %107 = sbr.rel (%p104) target = $region24
      $region23: #{tpu_custom_call.1} parent=5 // pred_region
        %s108 = ssub.s32 %s13, 1
        %s109 = sand.u32 %s26, 1
        %s110 = scalar_lea.sflag [#allocation3], %s109
        %s111 = sand.u32 %s26, 1
        %s112 = smul.addr %s111, 8
        %s113 = scalar_lea.vmem [#allocation2], %s112
        // Predicated region
        $region25: #{tpu_custom_call.1} parent=23 // pred_check
          %p114 = pneg %p39
        $region26: #{tpu_custom_call.1} parent=23 // pred_check_branch
          %116 = sbr.rel (%p114) target = $region28
        $region27: #{tpu_custom_call.1} parent=23 // pred_region
          %117 = dma.done %s110, 128
        $region28: #{tpu_custom_call.1} parent=23 // pred_fallthru
          _
        %s118 = sand.u32 %s26, 1
        %s119 = scalar_lea.sflag [#allocation3], %s118
        %s120 = sand.u32 %s26, 1
        %s121 = smul.addr %s120, 8
        %s122 = scalar_lea.vmem [#allocation2], %s121
        %p123 = pneg %p39
        %p124 = pneg %p36
        %p125 = pneg %p65
        %p126 = pneg %p62
        %s127 = sand.u32 %s52, 1
        %s128 = scalar_lea.sflag [#allocation4], %s127
        %s129 = sand.u32 %s52, 1
        %s130 = smul.addr %s129, 8
        %s131 = scalar_lea.vmem [#allocation5], %s130
        %v132 = vld [vmem:[%s113] sm:$0xff]
        %v133 = vand.u32 2147483647, %v132
        %v134 = vsub.f32 0.0, %v133
        %v135 = vmul.f32 %v134, 1.442695
        %v136 = vpow.pop %v135
        %v137 = vmul.f32 %v136, %v136
        %vm138 = vcmp.ge.f32.partialorder %v132, 0.0
        %v139 = vmul.f32 %v136, 2.0
        %v140 = vadd.f32 %v139, 1.0
        %v141 = vadd.f32 %v137, %v139
        %v142 = vsel %vm138, %v140, %v141
        %v143 = vmul.f32 %v137, 2.0
        %v144 = vsel %vm138, %v143, 2.0
        %v145 = vadd.f32 %v142, %v144
        %v146 = vrcp.pop %v145
        %v147 = vmul.f32 %v142, %v146
        %v148 = vmul.f32 %v132, %v147
        %149 = vst [vmem:[%s131] sm:$0xff] %v148
        %s150 = sand.u32 %s52, 1
        %s151 = scalar_lea.sflag [#allocation4], %s150
        %s152 = sand.u32 %s52, 1
        %s153 = smul.addr %s152, 8
        %s154 = scalar_lea.vmem [#allocation5], %s153
        // Predicated region
        $region29: #{tpu_custom_call.1} parent=23 // pred_check
          %p155 = pneg %p62
        $region30: #{tpu_custom_call.1} parent=23 // pred_check_branch
          %157 = sbr.rel (%p155) target = $region32
        $region31: #{tpu_custom_call.1} parent=23 // pred_region
          %s159 = ssub.s32 128, 128
          %160 = vsyncadd %s151, %s159
          %s161 = smul.addr %s18, 128
          %s162 = scalar_lea.hbm %s1, %s161
          %s164 = sshll.u32 %s154, 4
          %s165 = int_to_ptr.vmem [resolvable:$true] %s164
          %167 = dma.vmem_to_hbm [thread:$0]  %s165, 128, %s162, %s151
        $region32: #{tpu_custom_call.1} parent=23 // pred_fallthru
          _
      $region24: #{tpu_custom_call.1} parent=5 // pred_fallthru
        _
      %p168 = scmp.le.s32.totalorder 2, %s13
      // Predicated region
      $region33: #{tpu_custom_call.1} parent=5 // pred_check
        %p169 = pneg %p168
      $region34: #{tpu_custom_call.1} parent=5 // pred_check_branch
        %171 = sbr.rel (%p169) target = $region36
      $region35: #{tpu_custom_call.1} parent=5 // pred_region
        %s172 = ssub.s32 %s13, 2
        // Predicated region
        $region37: #{tpu_custom_call.1} parent=35 // pred_check
          %p173 = pneg %p68
        $region38: #{tpu_custom_call.1} parent=35 // pred_check_branch
          %175 = sbr.rel (%p173) target = $region40
        $region39: #{tpu_custom_call.1} parent=35 // pred_region
          %s176 = sand.u32 %s53, 1
          %s177 = scalar_lea.sflag [#allocation4], %s176
          %s178 = sand.u32 %s53, 1
          %s179 = smul.addr %s178, 8
          %s180 = scalar_lea.vmem [#allocation5], %s179
          %181 = dma.done %s177, 128
        $region40: #{tpu_custom_call.1} parent=35 // pred_fallthru
          _
      $region36: #{tpu_custom_call.1} parent=5 // pred_fallthru
        _
    $region6: #{tpu_custom_call.1} parent=1 // loop_footer
      %s17 = sadd.s32 1, %s13
    $region7: #{tpu_custom_call.1} parent=1 // loop_footer_branch
      %12 = sbr.rel target = $region3
    $region8: #{tpu_custom_call.1} parent=1 // loop_exit
      _
    %182 = vsyncpa [#allocation3], 1
    %s183 = scalar_lea.sflag [#allocation3], 1
    %184 = vsyncpa %s183, 1
    %185 = vsyncpa [#allocation4], 1
    %s186 = scalar_lea.sflag [#allocation4], 1
    %187 = vsyncpa %s186, 1

</llo_original>
